<compile_context>
chip_gen: v5e
topology: v5e:2x2
jax: 0.10.0
libtpu: 0.0.40
codegen_flags: <defaults>
</compile_context>

<pallas_src>
import functools

import jax
import jax.numpy as jnp
from jax.experimental import pallas as pl
from jax.experimental.pallas import tpu as pltpu


def _fused_conv_relu_mse_kernel(x_ref, w_ref, y_ref, mask_ref, out_ref, *, wp, n_taps):
    """One batch image per grid step (fused im2col + conv + ReLU + masked SSE).

    x_ref   : (KP, Lpad)        padded input channels (+ ones channel), flat (h, w)
    w_ref   : (n_taps, C_out, KP) per-tap weights; bias folded into tap 0's ones col
    y_ref   : (C_out, Lpad)      targets scattered at flat index h*Wp + w, 0 elsewhere
    mask_ref: (1, Lpad)          1.0 at valid output positions, 0.0 at padding lanes
    out_ref : (8, 128)           this image's sum of squared error (scalar, broadcast)
    """
    x = x_ref[...]                      # (KP, Lpad), lane-dense
    y = y_ref[...]                      # (C_out, Lpad), f32
    lpad = x.shape[-1]

    acc = jnp.zeros(y.shape, jnp.float32)
    # Unrolled 3x3 taps: shift the flat padded image by -(dh*Wp + dw) along lanes
    # (XLU roll, ~free) and accumulate a small MXU dot per tap.  This is im2col
    # done entirely in VMEM — no 9x patch slab in HBM.
    for t in range(n_taps):
        dh, dw = divmod(t, 3)
        off = dh * wp + dw
        xs = x if off == 0 else pltpu.roll(x, shift=lpad - off, axis=1)  # == jnp.roll(x, -off)
        acc = acc + jnp.dot(w_ref[t], xs, preferred_element_type=jnp.float32)

    preds = jnp.maximum(acc, 0.0)                 # ReLU (bias already folded in)
    diff = (preds - y) * mask_ref[...]            # zero out padded / wrapped lanes
    out_ref[...] = jnp.full(out_ref.shape, jnp.sum(diff * diff), dtype=jnp.float32)


def network_forward(xs, ys, weight, bias, *, matmul_dtype=jnp.float32):
    """Mirrors Network.forward(xs, ys): preds = model(*xs); return loss(preds, ys)."""
    (x,) = xs                                   # NCHW input, like the PyTorch module
    y = ys                                      # NCHW targets, same shape as preds
    B, C_in, H, W = x.shape
    C_out, _, kh, kw = weight.shape
    assert (kh, kw) == (3, 3)

    f32 = jnp.float32
    Hp, Wp = H + 2, W + 2                       # SAME padding for the 3x3 conv
    L = Hp * Wp                                 # flat padded spatial length per image
    Lpad = pl.cdiv(L, 128) * 128                # lane-dense width (multiple of 128)
    KP = max(8, pl.cdiv(C_in + 1, 8) * 8)       # channels + ones channel, 8-aligned
    n_taps = kh * kw

    # --- input: spatial SAME-pad, flatten (h,w) row-major, pad lanes, add ones/zero chans
    x_pad = jnp.pad(x.astype(f32), ((0, 0), (0, 0), (1, 1), (1, 1)))          # [B,Cin,Hp,Wp]
    x_flat = jnp.pad(x_pad.reshape(B, C_in, L), ((0, 0), (0, 0), (0, Lpad - L)))
    ones_ch = jnp.ones((B, 1, Lpad), f32)                                      # bias channel
    zero_ch = jnp.zeros((B, KP - C_in - 1, Lpad), f32)
    x_aug = jnp.concatenate([x_flat, ones_ch, zero_ch], axis=1).astype(matmul_dtype)

    # --- weights: [n_taps, C_out, KP]; bias folded as the ones-channel column of tap 0
    w_perm = jnp.transpose(weight.astype(f32), (2, 3, 0, 1)).reshape(n_taps, C_out, C_in)
    extra = jnp.zeros((n_taps, C_out, KP - C_in), f32).at[0, :, 0].set(bias.astype(f32))
    w_taps = jnp.concatenate([w_perm, extra], axis=-1).astype(matmul_dtype)

    # --- targets + validity mask on the same flat (h*Wp + w) grid (pad on the right)
    y_pad = jnp.pad(y.astype(f32), ((0, 0), (0, 0), (0, Hp - H), (0, Wp - W)))
    y_flat = jnp.pad(y_pad.reshape(B, C_out, L), ((0, 0), (0, 0), (0, Lpad - L)))
    mask = jnp.pad(jnp.ones((H, W), f32), ((0, Hp - H), (0, Wp - W)))
    mask = jnp.pad(mask.reshape(1, L), ((0, 0), (0, Lpad - L)))                # [1, Lpad]

    kernel = functools.partial(_fused_conv_relu_mse_kernel, wp=Wp, n_taps=n_taps)

    # One image per grid step; "parallel" lets v7x's two TensorCores split the batch.
    # Each step reads ~(KP + C_out)*Lpad*4 bytes (< 50 KB), so VMEM stays bounded for
    # any batch size.  TODO(synk): for very large H*W, additionally tile the lane dim.
    partials = pl.pallas_call(
        kernel,
        out_shape=jax.ShapeDtypeStruct((B, 8, 128), f32),
        grid=(B,),
        in_specs=[
            pl.BlockSpec((None, KP, Lpad), lambda b: (b, 0, 0)),
            pl.BlockSpec((n_taps, C_out, KP), lambda b: (0, 0, 0)),
            pl.BlockSpec((None, C_out, Lpad), lambda b: (b, 0, 0)),
            pl.BlockSpec((1, Lpad), lambda b: (0, 0)),
        ],
        out_specs=pl.BlockSpec((None, 8, 128), lambda b: (b, 0, 0)),
        compiler_params=pltpu.CompilerParams(
            dimension_semantics=("parallel",)),
    )(x_aug, w_taps, y_flat, mask)

    n_elems = B * C_out * H * W                 # MSELoss(reduction='mean') denominator
    return jnp.sum(partials[:, 0, 0]) / jnp.float32(n_elems)


# Pure-JAX reference for a correctness sanity check.
def network_forward_ref(xs, ys, weight, bias):
    (x,) = xs
    preds = jax.lax.conv_general_dilated(
        x.astype(jnp.float32), weight.astype(jnp.float32),
        window_strides=(1, 1), padding="SAME",
        dimension_numbers=("NCHW", "OIHW", "NCHW"))
    preds = jax.nn.relu(preds + bias.reshape(1, -1, 1, 1))
    return jnp.mean((preds - ys.astype(jnp.float32)) ** 2)


if __name__ == "__main__":
    B, C_in, C_out, H, W = 2, 4, 8, 16, 16

    key = jax.random.PRNGKey(0)
    kx, ky, kwt, kb = jax.random.split(key, 4)

    x = jax.random.normal(kx, (B, C_in, H, W), dtype=jnp.float32)      # NCHW input
    ys = jax.random.normal(ky, (B, C_out, H, W), dtype=jnp.float32)    # NCHW targets

    # Deterministic synthetic parameters (Conv2d(4, 8, 3, padding=1)).
    weight = 0.1 * jax.random.normal(kwt, (C_out, C_in, 3, 3), dtype=jnp.float32)
    bias = 0.05 * jax.random.normal(kb, (C_out,), dtype=jnp.float32)

    fwd = jax.jit(network_forward)
    loss = jax.block_until_ready(fwd((x,), ys, weight, bias))

    loss_ref = jax.block_until_ready(network_forward_ref((x,), ys, weight, bias))
    assert jnp.allclose(loss, loss_ref, rtol=2e-2, atol=2e-2), (loss, loss_ref)

    print("KERNEL_OK")
</pallas_src>

<mosaic_0001>
module attributes {stable_mosaic.version = 11 : i64} {
  func.func @_fused_conv_relu_mse_kernel(%arg0: i32, %arg1: memref<1x8x384xf32, #tpu.memory_space<vmem>>, %arg2: memref<9x8x8xf32, #tpu.memory_space<vmem>>, %arg3: memref<1x8x384xf32, #tpu.memory_space<vmem>>, %arg4: memref<1x384xf32, #tpu.memory_space<vmem>>, %arg5: memref<1x8x128xf32, #tpu.memory_space<vmem>>) attributes {dimension_semantics = [#tpu.dimension_semantics<parallel>], iteration_bounds = array<i64: 2>, scalar_prefetch = 0 : i64, scratch_operands = 0 : i64, tpu.core_type = #tpu.core_type<tc>, window_params = [{transform_indices = @transform_0, window_bounds = array<i64: 1, 8, 384>}, {pipeline_mode = #tpu.pipeline_mode<synchronous>, transform_indices = @transform_1, window_bounds = array<i64: 9, 8, 8>}, {transform_indices = @transform_2, window_bounds = array<i64: 1, 8, 384>}, {pipeline_mode = #tpu.pipeline_mode<synchronous>, transform_indices = @transform_3, window_bounds = array<i64: 1, 384>}, {transform_indices = @transform_4, window_bounds = array<i64: 1, 8, 128>}]} {
    %c0 = arith.constant 0 : index
    %c0_0 = arith.constant 0 : index
    %c0_1 = arith.constant 0 : index
    %0 = vector.load %arg1[%c0, %c0_0, %c0_1] : memref<1x8x384xf32, #tpu.memory_space<vmem>>, vector<1x8x384xf32>
    %1 = vector.shape_cast %0 : vector<1x8x384xf32> to vector<8x384xf32>
    %c0_2 = arith.constant 0 : index
    %c0_3 = arith.constant 0 : index
    %c0_4 = arith.constant 0 : index
    %2 = vector.load %arg3[%c0_2, %c0_3, %c0_4] : memref<1x8x384xf32, #tpu.memory_space<vmem>>, vector<1x8x384xf32>
    %3 = vector.shape_cast %2 : vector<1x8x384xf32> to vector<8x384xf32>
    %cst = arith.constant 0.000000e+00 : f32
    %4 = vector.broadcast %cst : f32 to vector<8x384xf32>
    %c0_5 = arith.constant 0 : index
    %c0_6 = arith.constant 0 : index
    %c0_7 = arith.constant 0 : index
    %5 = vector.load %arg2[%c0_5, %c0_6, %c0_7] : memref<9x8x8xf32, #tpu.memory_space<vmem>>, vector<1x8x8xf32>
    %6 = vector.shape_cast %5 : vector<1x8x8xf32> to vector<8x8xf32>
    %cst_8 = arith.constant dense<0.000000e+00> : vector<8x384xf32>
    %7 = tpu.matmul %6, %1, %cst_8 {dimension_numbers = #tpu.dot_dimension_numbers<[1], [0], [0], [1], [0, 0, 1, 1], [], []>} : vector<8x8xf32>, vector<8x384xf32>, vector<8x384xf32> -> vector<8x384xf32>
    %8 = arith.addf %4, %7 : vector<8x384xf32>
    %c383_i32 = arith.constant 383 : i32
    %9 = tpu.dynamic_rotate %1 by %c383_i32 dim 1 : vector<8x384xf32>, i32 -> vector<8x384xf32>
    %c1 = arith.constant 1 : index
    %c0_9 = arith.constant 0 : index
    %c0_10 = arith.constant 0 : index
    %10 = vector.load %arg2[%c1, %c0_9, %c0_10] : memref<9x8x8xf32, #tpu.memory_space<vmem>>, vector<1x8x8xf32>
    %11 = vector.shape_cast %10 : vector<1x8x8xf32> to vector<8x8xf32>
    %cst_11 = arith.constant dense<0.000000e+00> : vector<8x384xf32>
    %12 = tpu.matmul %11, %9, %cst_11 {dimension_numbers = #tpu.dot_dimension_numbers<[1], [0], [0], [1], [0, 0, 1, 1], [], []>} : vector<8x8xf32>, vector<8x384xf32>, vector<8x384xf32> -> vector<8x384xf32>
    %13 = arith.addf %8, %12 : vector<8x384xf32>
    %c382_i32 = arith.constant 382 : i32
    %14 = tpu.dynamic_rotate %1 by %c382_i32 dim 1 : vector<8x384xf32>, i32 -> vector<8x384xf32>
    %c2 = arith.constant 2 : index
    %c0_12 = arith.constant 0 : index
    %c0_13 = arith.constant 0 : index
    %15 = vector.load %arg2[%c2, %c0_12, %c0_13] : memref<9x8x8xf32, #tpu.memory_space<vmem>>, vector<1x8x8xf32>
    %16 = vector.shape_cast %15 : vector<1x8x8xf32> to vector<8x8xf32>
    %cst_14 = arith.constant dense<0.000000e+00> : vector<8x384xf32>
    %17 = tpu.matmul %16, %14, %cst_14 {dimension_numbers = #tpu.dot_dimension_numbers<[1], [0], [0], [1], [0, 0, 1, 1], [], []>} : vector<8x8xf32>, vector<8x384xf32>, vector<8x384xf32> -> vector<8x384xf32>
    %18 = arith.addf %13, %17 : vector<8x384xf32>
    %c366_i32 = arith.constant 366 : i32
    %19 = tpu.dynamic_rotate %1 by %c366_i32 dim 1 : vector<8x384xf32>, i32 -> vector<8x384xf32>
    %c3 = arith.constant 3 : index
    %c0_15 = arith.constant 0 : index
    %c0_16 = arith.constant 0 : index
    %20 = vector.load %arg2[%c3, %c0_15, %c0_16] : memref<9x8x8xf32, #tpu.memory_space<vmem>>, vector<1x8x8xf32>
    %21 = vector.shape_cast %20 : vector<1x8x8xf32> to vector<8x8xf32>
    %cst_17 = arith.constant dense<0.000000e+00> : vector<8x384xf32>
    %22 = tpu.matmul %21, %19, %cst_17 {dimension_numbers = #tpu.dot_dimension_numbers<[1], [0], [0], [1], [0, 0, 1, 1], [], []>} : vector<8x8xf32>, vector<8x384xf32>, vector<8x384xf32> -> vector<8x384xf32>
    %23 = arith.addf %18, %22 : vector<8x384xf32>
    %c365_i32 = arith.constant 365 : i32
    %24 = tpu.dynamic_rotate %1 by %c365_i32 dim 1 : vector<8x384xf32>, i32 -> vector<8x384xf32>
    %c4 = arith.constant 4 : index
    %c0_18 = arith.constant 0 : index
    %c0_19 = arith.constant 0 : index
    %25 = vector.load %arg2[%c4, %c0_18, %c0_19] : memref<9x8x8xf32, #tpu.memory_space<vmem>>, vector<1x8x8xf32>
    %26 = vector.shape_cast %25 : vector<1x8x8xf32> to vector<8x8xf32>
    %cst_20 = arith.constant dense<0.000000e+00> : vector<8x384xf32>
    %27 = tpu.matmul %26, %24, %cst_20 {dimension_numbers = #tpu.dot_dimension_numbers<[1], [0], [0], [1], [0, 0, 1, 1], [], []>} : vector<8x8xf32>, vector<8x384xf32>, vector<8x384xf32> -> vector<8x384xf32>
    %28 = arith.addf %23, %27 : vector<8x384xf32>
    %c364_i32 = arith.constant 364 : i32
    %29 = tpu.dynamic_rotate %1 by %c364_i32 dim 1 : vector<8x384xf32>, i32 -> vector<8x384xf32>
    %c5 = arith.constant 5 : index
    %c0_21 = arith.constant 0 : index
    %c0_22 = arith.constant 0 : index
    %30 = vector.load %arg2[%c5, %c0_21, %c0_22] : memref<9x8x8xf32, #tpu.memory_space<vmem>>, vector<1x8x8xf32>
    %31 = vector.shape_cast %30 : vector<1x8x8xf32> to vector<8x8xf32>
    %cst_23 = arith.constant dense<0.000000e+00> : vector<8x384xf32>
    %32 = tpu.matmul %31, %29, %cst_23 {dimension_numbers = #tpu.dot_dimension_numbers<[1], [0], [0], [1], [0, 0, 1, 1], [], []>} : vector<8x8xf32>, vector<8x384xf32>, vector<8x384xf32> -> vector<8x384xf32>
    %33 = arith.addf %28, %32 : vector<8x384xf32>
    %c348_i32 = arith.constant 348 : i32
    %34 = tpu.dynamic_rotate %1 by %c348_i32 dim 1 : vector<8x384xf32>, i32 -> vector<8x384xf32>
    %c6 = arith.constant 6 : index
    %c0_24 = arith.constant 0 : index
    %c0_25 = arith.constant 0 : index
    %35 = vector.load %arg2[%c6, %c0_24, %c0_25] : memref<9x8x8xf32, #tpu.memory_space<vmem>>, vector<1x8x8xf32>
    %36 = vector.shape_cast %35 : vector<1x8x8xf32> to vector<8x8xf32>
    %cst_26 = arith.constant dense<0.000000e+00> : vector<8x384xf32>
    %37 = tpu.matmul %36, %34, %cst_26 {dimension_numbers = #tpu.dot_dimension_numbers<[1], [0], [0], [1], [0, 0, 1, 1], [], []>} : vector<8x8xf32>, vector<8x384xf32>, vector<8x384xf32> -> vector<8x384xf32>
    %38 = arith.addf %33, %37 : vector<8x384xf32>
    %c347_i32 = arith.constant 347 : i32
    %39 = tpu.dynamic_rotate %1 by %c347_i32 dim 1 : vector<8x384xf32>, i32 -> vector<8x384xf32>
    %c7 = arith.constant 7 : index
    %c0_27 = arith.constant 0 : index
    %c0_28 = arith.constant 0 : index
    %40 = vector.load %arg2[%c7, %c0_27, %c0_28] : memref<9x8x8xf32, #tpu.memory_space<vmem>>, vector<1x8x8xf32>
    %41 = vector.shape_cast %40 : vector<1x8x8xf32> to vector<8x8xf32>
    %cst_29 = arith.constant dense<0.000000e+00> : vector<8x384xf32>
    %42 = tpu.matmul %41, %39, %cst_29 {dimension_numbers = #tpu.dot_dimension_numbers<[1], [0], [0], [1], [0, 0, 1, 1], [], []>} : vector<8x8xf32>, vector<8x384xf32>, vector<8x384xf32> -> vector<8x384xf32>
    %43 = arith.addf %38, %42 : vector<8x384xf32>
    %c346_i32 = arith.constant 346 : i32
    %44 = tpu.dynamic_rotate %1 by %c346_i32 dim 1 : vector<8x384xf32>, i32 -> vector<8x384xf32>
    %c8 = arith.constant 8 : index
    %c0_30 = arith.constant 0 : index
    %c0_31 = arith.constant 0 : index
    %45 = vector.load %arg2[%c8, %c0_30, %c0_31] : memref<9x8x8xf32, #tpu.memory_space<vmem>>, vector<1x8x8xf32>
    %46 = vector.shape_cast %45 : vector<1x8x8xf32> to vector<8x8xf32>
    %cst_32 = arith.constant dense<0.000000e+00> : vector<8x384xf32>
    %47 = tpu.matmul %46, %44, %cst_32 {dimension_numbers = #tpu.dot_dimension_numbers<[1], [0], [0], [1], [0, 0, 1, 1], [], []>} : vector<8x8xf32>, vector<8x384xf32>, vector<8x384xf32> -> vector<8x384xf32>
    %48 = arith.addf %43, %47 : vector<8x384xf32>
    %cst_33 = arith.constant 0.000000e+00 : f32
    %49 = vector.broadcast %cst_33 : f32 to vector<8x384xf32>
    %50 = arith.maximumf %48, %49 : vector<8x384xf32>
    %51 = arith.subf %50, %3 : vector<8x384xf32>
    %c0_34 = arith.constant 0 : index
    %c0_35 = arith.constant 0 : index
    %52 = vector.load %arg4[%c0_34, %c0_35] : memref<1x384xf32, #tpu.memory_space<vmem>>, vector<1x384xf32>
    %53 = vector.broadcast %52 : vector<1x384xf32> to vector<8x384xf32>
    %54 = arith.mulf %51, %53 : vector<8x384xf32>
    %55 = arith.mulf %54, %54 : vector<8x384xf32>
    %56 = vector.shape_cast %55 : vector<8x384xf32> to vector<1x8x384xf32>
    %cst_36 = arith.constant dense<0.000000e+00> : vector<1xf32>
    %57 = vector.multi_reduction <add>, %56, %cst_36 [1, 2] : vector<1x8x384xf32> to vector<1xf32>
    %58 = vector.shape_cast %57 : vector<1xf32> to vector<1x1x1xf32>
    %59 = vector.extract %58[0, 0, 0] : f32 from vector<1x1x1xf32>
    %60 = vector.broadcast %59 : f32 to vector<8x128xf32>
    %c0_37 = arith.constant 0 : index
    %c0_38 = arith.constant 0 : index
    %c0_39 = arith.constant 0 : index
    %61 = vector.load %arg5[%c0_37, %c0_38, %c0_39] : memref<1x8x128xf32, #tpu.memory_space<vmem>>, vector<1x8x128xf32>
    %62 = vector.shape_cast %61 : vector<1x8x128xf32> to vector<8x128xf32>
    %63 = vector.shape_cast %60 : vector<8x128xf32> to vector<1x8x128xf32>
    tpu.vector_store %arg5[%c0_37, %c0_38, %c0_39], %63 {strides = array<i32>} : memref<1x8x128xf32, #tpu.memory_space<vmem>>, vector<1x8x128xf32>,
    return
  }
  func.func @transform_0(%arg0: i32) -> (i32, i32, i32) {
    %c0_i32 = arith.constant 0 : i32
    %c0_i32_0 = arith.constant 0 : i32
    %c0_i32_1 = arith.constant 0 : i32
    return %arg0, %c0_i32, %c0_i32_0 : i32, i32, i32
  }
  func.func @transform_1(%arg0: i32) -> (i32, i32, i32) {
    %c0_i32 = arith.constant 0 : i32
    %c0_i32_0 = arith.constant 0 : i32
    %c0_i32_1 = arith.constant 0 : i32
    %c0_i32_2 = arith.constant 0 : i32
    return %c0_i32, %c0_i32_0, %c0_i32_1 : i32, i32, i32
  }
  func.func @transform_2(%arg0: i32) -> (i32, i32, i32) {
    %c0_i32 = arith.constant 0 : i32
    %c0_i32_0 = arith.constant 0 : i32
    %c0_i32_1 = arith.constant 0 : i32
    return %arg0, %c0_i32, %c0_i32_0 : i32, i32, i32
  }
  func.func @transform_3(%arg0: i32) -> (i32, i32) {
    %c0_i32 = arith.constant 0 : i32
    %c0_i32_0 = arith.constant 0 : i32
    %c0_i32_1 = arith.constant 0 : i32
    return %c0_i32, %c0_i32_0 : i32, i32
  }
  func.func @transform_4(%arg0: i32) -> (i32, i32, i32) {
    %c0_i32 = arith.constant 0 : i32
    %c0_i32_0 = arith.constant 0 : i32
    %c0_i32_1 = arith.constant 0 : i32
    return %arg0, %c0_i32, %c0_i32_0 : i32, i32, i32
  }
}

</mosaic_0001>

<llo_original>
// kernel: network_forward.1
$region0: #{network_forward.1}
  #allocation0 [shape = 'u32[]', space=smem, size = 0x4, offset = 0x4, fixed_abs, tag = 'smem constant byte address 0x4 - core index']
  #allocation1 [shape = 'u32[72,128]{1,0:T(1,128)}', space=vmem, size = 0x9000, scoped, tag = 'internal scratch']
  %s0 = inlined_call_operand.vmem [shape: f32[2,8,384], index: 0, kind: input, shape index: {}]
  %s1 = inlined_call_operand.vmem [shape: f32[9,8,8], index: 1, kind: input, shape index: {}]
  %s2 = inlined_call_operand.vmem [shape: f32[2,8,384], index: 2, kind: input, shape index: {}]
  %s3 = inlined_call_operand.vmem [shape: f32[1,384], index: 3, kind: input, shape index: {}]
  %s4 = inlined_call_operand.vmem [shape: f32[2,8,128], index: 4, kind: output, shape index: {}]
  %s5 = sld [smem:[#allocation0]]
  $region49: #{network_forward.1} parent=0
    _
  %s7 = ssub.s32 1, %s5
  %s8 = scalar_select 0, %s7, %s5
  loop: start=0, step=1, limit=4
  $region2: #{network_forward.1} parent=0 // loop_pre_header
    _
  $region3: #{network_forward.1} parent=0 // loop_header
    %s10 = sphi 0, %s14
    %p11 = scmp.ge.s32.totalorder %s10, 4
    %s20 = sphi 0, %s22
    %s23 = sphi 0, %s20
    %s24 = sphi 0, %s23
    %s40 = sphi 0, %s24
    %s44 = sphi 0, %s44
    %s46 = sphi 0, %s44
    %s47 = sphi 0, %s46
    %s61 = sphi 0, %s47
    %s67 = sphi 0, %s69
    %s70 = sphi 0, %s67
    %s71 = sphi 0, %s70
    %s87 = sphi 0, %s71
    %s91 = sphi 0, %s91
    %s93 = sphi 0, %s91
    %s94 = sphi 0, %s93
    %s108 = sphi 0, %s94
    %s114 = sphi 0, %s116
    %s117 = sphi 0, %s114
    %s118 = sphi 0, %s117
    %s134 = sphi 0, %s118
  $region4: #{network_forward.1} parent=0 // loop_header_branch
    %13 = sbr.rel (%p11) target = $region8
  $region5: #{network_forward.1} parent=0 // loop_body
    %s15 = ssub.s32 %s10, 1
    %s16 = ssub.s32 %s10, 2
    %s17 = sadd.s32 %s10, 1
    %s18 = ssub.s32 %s10, %s17
    %p19 = scmp.eq.s32.totalorder %s18, 0
    %s21 = sadd.s32 %s20, 1
    %s22 = scalar_select %p19, %s20, %s21
    %p25 = pneg %p19
    %p26 = scmp.eq.s32.totalorder %s10, 1
    %p27 = por %p25, %p26
    %p28 = scmp.ne.s32.totalorder %s20, %s23
    %p29 = scmp.eq.s32.totalorder %s10, 0
    %p30 = por %p28, %p29
    %p31 = scmp.ne.s32.totalorder %s20, %s23
    %p32 = scmp.eq.s32.totalorder %s15, 1
    %p33 = por %p31, %p32
    %p34 = scmp.ne.s32.totalorder %s23, %s24
    %p35 = scmp.eq.s32.totalorder %s15, 0
    %p36 = por %p34, %p35
    %p37 = scmp.ne.s32.totalorder %s23, %s24
    %p38 = scmp.eq.s32.totalorder %s16, 1
    %p39 = por %p37, %p38
    %p41 = scmp.ne.s32.totalorder %s24, %s40
    %p42 = scmp.eq.s32.totalorder %s16, 0
    %p43 = por %p41, %p42
    %s45 = sadd.s32 %s44, 1
    %p48 = scmp.eq.s32.totalorder %s10, 1
    %p49 = scmp.ne.s32.totalorder %s44, %s46
    %p50 = scmp.eq.s32.totalorder %s10, 0
    %p51 = por %p49, %p50
    %p52 = scmp.ne.s32.totalorder %s44, %s46
    %p53 = scmp.eq.s32.totalorder %s15, 1
    %p54 = por %p52, %p53
    %p55 = scmp.ne.s32.totalorder %s46, %s47
    %p56 = scmp.eq.s32.totalorder %s15, 0
    %p57 = por %p55, %p56
    %p58 = scmp.ne.s32.totalorder %s46, %s47
    %p59 = scmp.eq.s32.totalorder %s16, 1
    %p60 = por %p58, %p59
    %p62 = scmp.ne.s32.totalorder %s47, %s61
    %p63 = scmp.eq.s32.totalorder %s16, 0
    %p64 = por %p62, %p63
    %s65 = ssub.s32 %s10, %s17
    %p66 = scmp.eq.s32.totalorder %s65, 0
    %s68 = sadd.s32 %s67, 1
    %s69 = scalar_select %p66, %s67, %s68
    %p72 = pneg %p66
    %p73 = scmp.eq.s32.totalorder %s10, 1
    %p74 = por %p72, %p73
    %p75 = scmp.ne.s32.totalorder %s67, %s70
    %p76 = scmp.eq.s32.totalorder %s10, 0
    %p77 = por %p75, %p76
    %p78 = scmp.ne.s32.totalorder %s67, %s70
    %p79 = scmp.eq.s32.totalorder %s15, 1
    %p80 = por %p78, %p79
    %p81 = scmp.ne.s32.totalorder %s70, %s71
    %p82 = scmp.eq.s32.totalorder %s15, 0
    %p83 = por %p81, %p82
    %p84 = scmp.ne.s32.totalorder %s70, %s71
    %p85 = scmp.eq.s32.totalorder %s16, 1
    %p86 = por %p84, %p85
    %p88 = scmp.ne.s32.totalorder %s71, %s87
    %p89 = scmp.eq.s32.totalorder %s16, 0
    %p90 = por %p88, %p89
    %s92 = sadd.s32 %s91, 1
    %p95 = scmp.eq.s32.totalorder %s10, 1
    %p96 = scmp.ne.s32.totalorder %s91, %s93
    %p97 = scmp.eq.s32.totalorder %s10, 0
    %p98 = por %p96, %p97
    %p99 = scmp.ne.s32.totalorder %s91, %s93
    %p100 = scmp.eq.s32.totalorder %s15, 1
    %p101 = por %p99, %p100
    %p102 = scmp.ne.s32.totalorder %s93, %s94
    %p103 = scmp.eq.s32.totalorder %s15, 0
    %p104 = por %p102, %p103
    %p105 = scmp.ne.s32.totalorder %s93, %s94
    %p106 = scmp.eq.s32.totalorder %s16, 1
    %p107 = por %p105, %p106
    %p109 = scmp.ne.s32.totalorder %s94, %s108
    %p110 = scmp.eq.s32.totalorder %s16, 0
    %p111 = por %p109, %p110
    %s112 = ssub.s32 %s10, %s17
    %p113 = scmp.eq.s32.totalorder %s112, 0
    %s115 = sadd.s32 %s114, 1
    %s116 = scalar_select %p113, %s114, %s115
    %p119 = pneg %p113
    %p120 = scmp.eq.s32.totalorder %s10, 1
    %p121 = por %p119, %p120
    %p122 = scmp.ne.s32.totalorder %s114, %s117
    %p123 = scmp.eq.s32.totalorder %s10, 0
    %p124 = por %p122, %p123
    %p125 = scmp.ne.s32.totalorder %s114, %s117
    %p126 = scmp.eq.s32.totalorder %s15, 1
    %p127 = por %p125, %p126
    %p128 = scmp.ne.s32.totalorder %s117, %s118
    %p129 = scmp.eq.s32.totalorder %s15, 0
    %p130 = por %p128, %p129
    %p131 = scmp.ne.s32.totalorder %s117, %s118
    %p132 = scmp.eq.s32.totalorder %s16, 1
    %p133 = por %p131, %p132
    %p135 = scmp.ne.s32.totalorder %s118, %s134
    %p136 = scmp.eq.s32.totalorder %s16, 0
    %p137 = por %p135, %p136
    %p138 = scmp.le.s32.totalorder 1, %s10
    %p139 = scmp.lt.s32.totalorder %s10, 3
    %p140 = pnand %p138, %p139
    %p141 = pneg %p140
    // Predicated region
    $region9: #{network_forward.1} parent=5 // pred_check
      _
    $region10: #{network_forward.1} parent=5 // pred_check_branch
      %143 = sbr.rel (%p140) target = $region12
    $region11: #{network_forward.1} parent=5 // pred_region
      %s144 = ssub.s32 %s10, 1
      // Predicated region
      $region13: #{network_forward.1} parent=11 // pred_check
        %p145 = pneg %p57
      $region14: #{network_forward.1} parent=11 // pred_check_branch
        %147 = sbr.rel (%p145) target = $region16
      $region15: #{network_forward.1} parent=11 // pred_region
        _
      $region16: #{network_forward.1} parent=11 // pred_fallthru
        _
      // Predicated region
      $region17: #{network_forward.1} parent=11 // pred_check
        %p148 = pneg %p104
      $region18: #{network_forward.1} parent=11 // pred_check_branch
        %150 = sbr.rel (%p148) target = $region20
      $region19: #{network_forward.1} parent=11 // pred_region
        _
      $region20: #{network_forward.1} parent=11 // pred_fallthru
        _
    $region12: #{network_forward.1} parent=5 // pred_fallthru
      _
    %p151 = scmp.lt.s32.totalorder %s10, 2
    // Predicated region
    $region21: #{network_forward.1} parent=5 // pred_check
      %p152 = pneg %p151
    $region22: #{network_forward.1} parent=5 // pred_check_branch
      %154 = sbr.rel (%p152) target = $region24
    $region23: #{network_forward.1} parent=5 // pred_region
      // Predicated region
      $region25: #{network_forward.1} parent=23 // pred_check
        %p155 = pneg %p30
      $region26: #{network_forward.1} parent=23 // pred_check_branch
        %157 = sbr.rel (%p155) target = $region28
      $region27: #{network_forward.1} parent=23 // pred_region
        %p158 = scmp.lt.s32.totalorder %s10, 1
        %s159 = scalar_select %p158, %s10, 1
        %s160 = smul.addr %s159, 3
        %s161 = smul.addr %s160, 8
        %s162 = scalar_lea.vmem %s0, %s161
      $region28: #{network_forward.1} parent=23 // pred_fallthru
        _
      // Predicated region
      $region29: #{network_forward.1} parent=23 // pred_check
        %p163 = pneg %p77
      $region30: #{network_forward.1} parent=23 // pred_check_branch
        %165 = sbr.rel (%p163) target = $region32
      $region31: #{network_forward.1} parent=23 // pred_region
        %p166 = scmp.lt.s32.totalorder %s10, 1
        %s167 = scalar_select %p166, %s10, 1
        %s168 = smul.addr %s167, 3
        %s169 = smul.addr %s168, 8
        %s170 = scalar_lea.vmem %s2, %s169
      $region32: #{network_forward.1} parent=23 // pred_fallthru
        _
    $region24: #{network_forward.1} parent=5 // pred_fallthru
      _
    %p171 = scmp.le.s32.totalorder 1, %s10
    %p172 = scmp.lt.s32.totalorder %s10, 3
    %p173 = pnand %p171, %p172
    %p174 = pneg %p173
    // Predicated region
    $region33: #{network_forward.1} parent=5 // pred_check
      _
    $region34: #{network_forward.1} parent=5 // pred_check_branch
      %176 = sbr.rel (%p173) target = $region36
    $region35: #{network_forward.1} parent=5 // pred_region
      %s177 = ssub.s32 %s10, 1
      %p178 = scmp.lt.s32.totalorder %s15, 1
      %s179 = scalar_select %p178, %s15, 1
      %s180 = smul.addr %s179, 3
      %s181 = smul.addr %s180, 8
      %s182 = scalar_lea.vmem %s0, %s181
      %p183 = pneg %p36
      %p184 = pneg %p33
      %p185 = pneg %p57
      %p186 = pneg %p54
      %p187 = scmp.lt.s32.totalorder %s15, 1
      %s188 = scalar_select %p187, %s15, 1
      %s189 = smul.addr %s188, 3
      %s190 = smul.addr %s189, 8
      %s191 = scalar_lea.vmem %s2, %s190
      %p192 = pneg %p83
      %p193 = pneg %p80
      %p194 = pneg %p104
      %p195 = pneg %p101
      %p196 = pneg %p130
      %p197 = pneg %p127
      %p198 = scmp.lt.s32.totalorder %s15, 1
      %s199 = scalar_select %p198, %s15, 1
      %s200 = smul.addr %s199, 8
      %s201 = scalar_lea.vmem %s4, %s200
      %p202 = scmp.lt.s32.totalorder %s15, 1
      %s203 = scalar_select %p202, %s15, 1
      %s204 = smul.addr %s203, 3
      %s205 = smul.addr %s204, 8
      %s206 = scalar_lea.vmem %s0, %s205
      %p207 = scmp.lt.s32.totalorder %s15, 1
      %s208 = scalar_select %p207, %s15, 1
      %s209 = smul.addr %s208, 3
      %s210 = smul.addr %s209, 8
      %s211 = scalar_lea.vmem %s2, %s210
      %p212 = scmp.lt.s32.totalorder %s15, 1
      %s213 = scalar_select %p212, %s15, 1
      %s214 = smul.addr %s213, 8
      %s215 = scalar_lea.vmem %s4, %s214
      %v216 = vld [vmem:[%s206] sm:$0xff]
      %v217 = vld [vmem:[%s206 + $0x8] sm:$0xff]
      %v218 = vld [vmem:[%s206 + $0x10] sm:$0xff]
      %v219 = vld [vmem:[%s211] sm:$0xff]
      %v220 = vld [vmem:[%s211 + $0x8] sm:$0xff]
      %v221 = vld [vmem:[%s211 + $0x10] sm:$0xff]
      %v222 = vld [vmem:[%s1] sm:$0xff]
      %223 = vrot.lane.b32.xlu0 %v216, 127
      %v224 = vpop.permute.xlu0 %223
      %225 = vrot.lane.b32.xlu0 %v217, 127
      %v226 = vpop.permute.xlu0 %225
      %227 = vrot.lane.b32.xlu0 %v218, 127
      %v228 = vpop.permute.xlu0 %227
      %v229 = vlaneseq
      %v230 = vand.u32 %v229, 127
      %vm231 = vcmp.lt.s32.totalorder %v230, 127
      %v232 = vsel %vm231, %v226, %v228
      %v233 = vsel %vm231, %v224, %v226
      %v234 = vsel %vm231, %v228, %v224
      %s235 = scalar_lea.vmem %s1, 8
      %v236 = vld [vmem:[%s235] sm:$0xff]
      %vm237 = vcmask 64512
      %v239 = vsel %vm237, %v236, 0
      %241 = vmatpush.msra.mxu0 0.0
      %242 = vmatpush.msra.mxu0 0.0
      %243 = vmatpush.msra.mxu0 0.0
      %244 = vmatpush.msra.mxu0 0.0
      %245 = vmatpush.msra.mxu0 0.0
      %246 = vmatpush.msra.mxu0 0.0
      %247 = vmatpush.msra.mxu0 0.0
      %248 = vmatpush.msra.mxu0 0.0
      %249 = vmatpush.msra.mxu0 0.0
      %250 = vmatpush.msra.mxu0 0.0
      %251 = vmatpush.msra.mxu0 0.0
      %252 = vmatpush.msra.mxu0 0.0
      %253 = vmatpush.msra.mxu0 0.0
      %254 = vmatpush.msra.mxu0 0.0
      %255 = vmatpush.msra.mxu0 0.0
      %256 = vmatpush.msra.mxu0 %v233
      %257 = vmatmul.f32.gmra.mxu0 %v239
      %v258 = vpop.f32.mrf.mxu0
      %v259 = vadd.f32 0.0, %v258
      %260 = vdwg.mxu0
      %261 = vmatpush.msra.mxu0 0.0
      %262 = vmatpush.msra.mxu0 0.0
      %263 = vmatpush.msra.mxu0 0.0
      %264 = vmatpush.msra.mxu0 0.0
      %265 = vmatpush.msra.mxu0 0.0
      %266 = vmatpush.msra.mxu0 0.0
      %267 = vmatpush.msra.mxu0 0.0
      %268 = vmatpush.msra.mxu0 0.0
      %269 = vmatpush.msra.mxu0 0.0
      %270 = vmatpush.msra.mxu0 0.0
      %271 = vmatpush.msra.mxu0 0.0
      %272 = vmatpush.msra.mxu0 0.0
      %273 = vmatpush.msra.mxu0 0.0
      %274 = vmatpush.msra.mxu0 0.0
      %275 = vmatpush.msra.mxu0 0.0
      %276 = vmatpush.msra.mxu0 %v232
      %277 = vmatmul.f32.gmra.mxu0 %v239
      %v278 = vpop.f32.mrf.mxu0
      %v279 = vadd.f32 0.0, %v278
      %280 = vdwg.mxu0
      %281 = vmatpush.msra.mxu0 0.0
      %282 = vmatpush.msra.mxu0 0.0
      %283 = vmatpush.msra.mxu0 0.0
      %284 = vmatpush.msra.mxu0 0.0
      %285 = vmatpush.msra.mxu0 0.0
      %286 = vmatpush.msra.mxu0 0.0
      %287 = vmatpush.msra.mxu0 0.0
      %288 = vmatpush.msra.mxu0 0.0
      %289 = vmatpush.msra.mxu0 0.0
      %290 = vmatpush.msra.mxu0 0.0
      %291 = vmatpush.msra.mxu0 0.0
      %292 = vmatpush.msra.mxu0 0.0
      %293 = vmatpush.msra.mxu0 0.0
      %294 = vmatpush.msra.mxu0 0.0
      %295 = vmatpush.msra.mxu0 0.0
      %296 = vmatpush.msra.mxu0 %v234
      %297 = vmatmul.f32.gmra.mxu0 %v239
      %v298 = vpop.f32.mrf.mxu0
      %v299 = vadd.f32 0.0, %v298
      %300 = vdwg.mxu0
      %v302 = vsel %vm237, %v222, 0
      %304 = vmatpush.msra.mxu0 0.0
      %305 = vmatpush.msra.mxu0 0.0
      %306 = vmatpush.msra.mxu0 0.0
      %307 = vmatpush.msra.mxu0 0.0
      %308 = vmatpush.msra.mxu0 0.0
      %309 = vmatpush.msra.mxu0 0.0
      %310 = vmatpush.msra.mxu0 0.0
      %311 = vmatpush.msra.mxu0 0.0
      %312 = vmatpush.msra.mxu0 0.0
      %313 = vmatpush.msra.mxu0 0.0
      %314 = vmatpush.msra.mxu0 0.0
      %315 = vmatpush.msra.mxu0 0.0
      %316 = vmatpush.msra.mxu0 0.0
      %317 = vmatpush.msra.mxu0 0.0
      %318 = vmatpush.msra.mxu0 0.0
      %319 = vmatpush.msra.mxu0 %v216
      %320 = vmatmul.f32.gmra.mxu0 %v302
      %v321 = vpop.f32.mrf.mxu0
      %v322 = vadd.f32 %v259, %v321
      %323 = vdwg.mxu0
      %324 = vmatpush.msra.mxu0 0.0
      %325 = vmatpush.msra.mxu0 0.0
      %326 = vmatpush.msra.mxu0 0.0
      %327 = vmatpush.msra.mxu0 0.0
      %328 = vmatpush.msra.mxu0 0.0
      %329 = vmatpush.msra.mxu0 0.0
      %330 = vmatpush.msra.mxu0 0.0
      %331 = vmatpush.msra.mxu0 0.0
      %332 = vmatpush.msra.mxu0 0.0
      %333 = vmatpush.msra.mxu0 0.0
      %334 = vmatpush.msra.mxu0 0.0
      %335 = vmatpush.msra.mxu0 0.0
      %336 = vmatpush.msra.mxu0 0.0
      %337 = vmatpush.msra.mxu0 0.0
      %338 = vmatpush.msra.mxu0 0.0
      %339 = vmatpush.msra.mxu0 %v217
      %340 = vmatmul.f32.gmra.mxu0 %v302
      %v341 = vpop.f32.mrf.mxu0
      %v342 = vadd.f32 %v279, %v341
      %343 = vdwg.mxu0
      %344 = vmatpush.msra.mxu0 0.0
      %345 = vmatpush.msra.mxu0 0.0
      %346 = vmatpush.msra.mxu0 0.0
      %347 = vmatpush.msra.mxu0 0.0
      %348 = vmatpush.msra.mxu0 0.0
      %349 = vmatpush.msra.mxu0 0.0
      %350 = vmatpush.msra.mxu0 0.0
      %351 = vmatpush.msra.mxu0 0.0
      %352 = vmatpush.msra.mxu0 0.0
      %353 = vmatpush.msra.mxu0 0.0
      %354 = vmatpush.msra.mxu0 0.0
      %355 = vmatpush.msra.mxu0 0.0
      %356 = vmatpush.msra.mxu0 0.0
      %357 = vmatpush.msra.mxu0 0.0
      %358 = vmatpush.msra.mxu0 0.0
      %359 = vmatpush.msra.mxu0 %v218
      %360 = vmatmul.f32.gmra.mxu0 %v302
      %v361 = vpop.f32.mrf.mxu0
      %v362 = vadd.f32 %v299, %v361
      %363 = vdwg.mxu0
      %364 = vrot.lane.b32.xlu0 %v216, 126
      %v365 = vpop.permute.xlu0 %364
      %366 = vrot.lane.b32.xlu0 %v217, 126
      %v367 = vpop.permute.xlu0 %366
      %368 = vrot.lane.b32.xlu0 %v218, 126
      %v369 = vpop.permute.xlu0 %368
      %vm370 = vcmp.lt.s32.totalorder %v230, 126
      %v371 = vsel %vm370, %v367, %v369
      %v372 = vsel %vm370, %v365, %v367
      %v373 = vsel %vm370, %v369, %v365
      %s374 = scalar_lea.vmem %s1, 16
      %v375 = vld [vmem:[%s374] sm:$0xff]
      %v377 = vsel %vm237, %v375, 0
      %379 = vmatpush.msra.mxu0 0.0
      %380 = vmatpush.msra.mxu0 0.0
      %381 = vmatpush.msra.mxu0 0.0
      %382 = vmatpush.msra.mxu0 0.0
      %383 = vmatpush.msra.mxu0 0.0
      %384 = vmatpush.msra.mxu0 0.0
      %385 = vmatpush.msra.mxu0 0.0
      %386 = vmatpush.msra.mxu0 0.0
      %387 = vmatpush.msra.mxu0 0.0
      %388 = vmatpush.msra.mxu0 0.0
      %389 = vmatpush.msra.mxu0 0.0
      %390 = vmatpush.msra.mxu0 0.0
      %391 = vmatpush.msra.mxu0 0.0
      %392 = vmatpush.msra.mxu0 0.0
      %393 = vmatpush.msra.mxu0 0.0
      %394 = vmatpush.msra.mxu0 %v372
      %395 = vmatmul.f32.gmra.mxu0 %v377
      %v396 = vpop.f32.mrf.mxu0
      %v397 = vadd.f32 0.0, %v396
      %398 = vdwg.mxu0
      %399 = vmatpush.msra.mxu0 0.0
      %400 = vmatpush.msra.mxu0 0.0
      %401 = vmatpush.msra.mxu0 0.0
      %402 = vmatpush.msra.mxu0 0.0
      %403 = vmatpush.msra.mxu0 0.0
      %404 = vmatpush.msra.mxu0 0.0
      %405 = vmatpush.msra.mxu0 0.0
      %406 = vmatpush.msra.mxu0 0.0
      %407 = vmatpush.msra.mxu0 0.0
      %408 = vmatpush.msra.mxu0 0.0
      %409 = vmatpush.msra.mxu0 0.0
      %410 = vmatpush.msra.mxu0 0.0
      %411 = vmatpush.msra.mxu0 0.0
      %412 = vmatpush.msra.mxu0 0.0
      %413 = vmatpush.msra.mxu0 0.0
      %414 = vmatpush.msra.mxu0 %v371
      %415 = vmatmul.f32.gmra.mxu0 %v377
      %v416 = vpop.f32.mrf.mxu0
      %v417 = vadd.f32 0.0, %v416
      %418 = vdwg.mxu0
      %419 = vmatpush.msra.mxu0 0.0
      %420 = vmatpush.msra.mxu0 0.0
      %421 = vmatpush.msra.mxu0 0.0
      %422 = vmatpush.msra.mxu0 0.0
      %423 = vmatpush.msra.mxu0 0.0
      %424 = vmatpush.msra.mxu0 0.0
      %425 = vmatpush.msra.mxu0 0.0
      %426 = vmatpush.msra.mxu0 0.0
      %427 = vmatpush.msra.mxu0 0.0
      %428 = vmatpush.msra.mxu0 0.0
      %429 = vmatpush.msra.mxu0 0.0
      %430 = vmatpush.msra.mxu0 0.0
      %431 = vmatpush.msra.mxu0 0.0
      %432 = vmatpush.msra.mxu0 0.0
      %433 = vmatpush.msra.mxu0 0.0
      %434 = vmatpush.msra.mxu0 %v373
      %435 = vmatmul.f32.gmra.mxu0 %v377
      %v436 = vpop.f32.mrf.mxu0
      %v437 = vadd.f32 0.0, %v436
      %438 = vdwg.mxu0
      %v439 = vadd.f32 %v322, %v397
      %v440 = vadd.f32 %v342, %v417
      %v441 = vadd.f32 %v362, %v437
      %442 = vrot.lane.b32.xlu0 %v216, 110
      %v443 = vpop.permute.xlu0 %442
      %444 = vrot.lane.b32.xlu0 %v217, 110
      %v445 = vpop.permute.xlu0 %444
      %446 = vrot.lane.b32.xlu0 %v218, 110
      %v447 = vpop.permute.xlu0 %446
      %vm448 = vcmp.lt.s32.totalorder %v230, 110
      %v449 = vsel %vm448, %v445, %v447
      %v450 = vsel %vm448, %v443, %v445
      %v451 = vsel %vm448, %v447, %v443
      %s452 = scalar_lea.vmem %s1, 24
      %v453 = vld [vmem:[%s452] sm:$0xff]
      %v455 = vsel %vm237, %v453, 0
      %457 = vmatpush.msra.mxu0 0.0
      %458 = vmatpush.msra.mxu0 0.0
      %459 = vmatpush.msra.mxu0 0.0
      %460 = vmatpush.msra.mxu0 0.0
      %461 = vmatpush.msra.mxu0 0.0
      %462 = vmatpush.msra.mxu0 0.0
      %463 = vmatpush.msra.mxu0 0.0
      %464 = vmatpush.msra.mxu0 0.0
      %465 = vmatpush.msra.mxu0 0.0
      %466 = vmatpush.msra.mxu0 0.0
      %467 = vmatpush.msra.mxu0 0.0
      %468 = vmatpush.msra.mxu0 0.0
      %469 = vmatpush.msra.mxu0 0.0
      %470 = vmatpush.msra.mxu0 0.0
      %471 = vmatpush.msra.mxu0 0.0
      %472 = vmatpush.msra.mxu0 %v450
      %473 = vmatmul.f32.gmra.mxu0 %v455
      %v474 = vpop.f32.mrf.mxu0
      %v475 = vadd.f32 0.0, %v474
      %476 = vdwg.mxu0
      %477 = vmatpush.msra.mxu0 0.0
      %478 = vmatpush.msra.mxu0 0.0
      %479 = vmatpush.msra.mxu0 0.0
      %480 = vmatpush.msra.mxu0 0.0
      %481 = vmatpush.msra.mxu0 0.0
      %482 = vmatpush.msra.mxu0 0.0
      %483 = vmatpush.msra.mxu0 0.0
      %484 = vmatpush.msra.mxu0 0.0
      %485 = vmatpush.msra.mxu0 0.0
      %486 = vmatpush.msra.mxu0 0.0
      %487 = vmatpush.msra.mxu0 0.0
      %488 = vmatpush.msra.mxu0 0.0
      %489 = vmatpush.msra.mxu0 0.0
      %490 = vmatpush.msra.mxu0 0.0
      %491 = vmatpush.msra.mxu0 0.0
      %492 = vmatpush.msra.mxu0 %v449
      %493 = vmatmul.f32.gmra.mxu0 %v455
      %v494 = vpop.f32.mrf.mxu0
      %v495 = vadd.f32 0.0, %v494
      %496 = vdwg.mxu0
      %497 = vmatpush.msra.mxu0 0.0
      %498 = vmatpush.msra.mxu0 0.0
      %499 = vmatpush.msra.mxu0 0.0
      %500 = vmatpush.msra.mxu0 0.0
      %501 = vmatpush.msra.mxu0 0.0
      %502 = vmatpush.msra.mxu0 0.0
      %503 = vmatpush.msra.mxu0 0.0
      %504 = vmatpush.msra.mxu0 0.0
      %505 = vmatpush.msra.mxu0 0.0
      %506 = vmatpush.msra.mxu0 0.0
      %507 = vmatpush.msra.mxu0 0.0
      %508 = vmatpush.msra.mxu0 0.0
      %509 = vmatpush.msra.mxu0 0.0
      %510 = vmatpush.msra.mxu0 0.0
      %511 = vmatpush.msra.mxu0 0.0
      %512 = vmatpush.msra.mxu0 %v451
      %513 = vmatmul.f32.gmra.mxu0 %v455
      %v514 = vpop.f32.mrf.mxu0
      %v515 = vadd.f32 0.0, %v514
      %516 = vdwg.mxu0
      %v517 = vadd.f32 %v439, %v475
      %v518 = vadd.f32 %v440, %v495
      %v519 = vadd.f32 %v441, %v515
      %520 = vrot.lane.b32.xlu0 %v216, 109
      %v521 = vpop.permute.xlu0 %520
      %522 = vrot.lane.b32.xlu0 %v217, 109
      %v523 = vpop.permute.xlu0 %522
      %524 = vrot.lane.b32.xlu0 %v218, 109
      %v525 = vpop.permute.xlu0 %524
      %vm526 = vcmp.lt.s32.totalorder %v230, 109
      %v527 = vsel %vm526, %v523, %v525
      %v528 = vsel %vm526, %v521, %v523
      %v529 = vsel %vm526, %v525, %v521
      %s530 = scalar_lea.vmem %s1, 32
      %v531 = vld [vmem:[%s530] sm:$0xff]
      %v533 = vsel %vm237, %v531, 0
      %535 = vmatpush.msra.mxu0 0.0
      %536 = vmatpush.msra.mxu0 0.0
      %537 = vmatpush.msra.mxu0 0.0
      %538 = vmatpush.msra.mxu0 0.0
      %539 = vmatpush.msra.mxu0 0.0
      %540 = vmatpush.msra.mxu0 0.0
      %541 = vmatpush.msra.mxu0 0.0
      %542 = vmatpush.msra.mxu0 0.0
      %543 = vmatpush.msra.mxu0 0.0
      %544 = vmatpush.msra.mxu0 0.0
      %545 = vmatpush.msra.mxu0 0.0
      %546 = vmatpush.msra.mxu0 0.0
      %547 = vmatpush.msra.mxu0 0.0
      %548 = vmatpush.msra.mxu0 0.0
      %549 = vmatpush.msra.mxu0 0.0
      %550 = vmatpush.msra.mxu0 %v528
      %551 = vmatmul.f32.gmra.mxu0 %v533
      %v552 = vpop.f32.mrf.mxu0
      %v553 = vadd.f32 0.0, %v552
      %554 = vdwg.mxu0
      %555 = vmatpush.msra.mxu0 0.0
      %556 = vmatpush.msra.mxu0 0.0
      %557 = vmatpush.msra.mxu0 0.0
      %558 = vmatpush.msra.mxu0 0.0
      %559 = vmatpush.msra.mxu0 0.0
      %560 = vmatpush.msra.mxu0 0.0
      %561 = vmatpush.msra.mxu0 0.0
      %562 = vmatpush.msra.mxu0 0.0
      %563 = vmatpush.msra.mxu0 0.0
      %564 = vmatpush.msra.mxu0 0.0
      %565 = vmatpush.msra.mxu0 0.0
      %566 = vmatpush.msra.mxu0 0.0
      %567 = vmatpush.msra.mxu0 0.0
      %568 = vmatpush.msra.mxu0 0.0
      %569 = vmatpush.msra.mxu0 0.0
      %570 = vmatpush.msra.mxu0 %v527
      %571 = vmatmul.f32.gmra.mxu0 %v533
      %v572 = vpop.f32.mrf.mxu0
      %v573 = vadd.f32 0.0, %v572
      %574 = vdwg.mxu0
      %575 = vmatpush.msra.mxu0 0.0
      %576 = vmatpush.msra.mxu0 0.0
      %577 = vmatpush.msra.mxu0 0.0
      %578 = vmatpush.msra.mxu0 0.0
      %579 = vmatpush.msra.mxu0 0.0
      %580 = vmatpush.msra.mxu0 0.0
      %581 = vmatpush.msra.mxu0 0.0
      %582 = vmatpush.msra.mxu0 0.0
      %583 = vmatpush.msra.mxu0 0.0
      %584 = vmatpush.msra.mxu0 0.0
      %585 = vmatpush.msra.mxu0 0.0
      %586 = vmatpush.msra.mxu0 0.0
      %587 = vmatpush.msra.mxu0 0.0
      %588 = vmatpush.msra.mxu0 0.0
      %589 = vmatpush.msra.mxu0 0.0
      %590 = vmatpush.msra.mxu0 %v529
      %591 = vmatmul.f32.gmra.mxu0 %v533
      %v592 = vpop.f32.mrf.mxu0
      %v593 = vadd.f32 0.0, %v592
      %594 = vdwg.mxu0
      %v595 = vadd.f32 %v517, %v553
      %v596 = vadd.f32 %v518, %v573
      %v597 = vadd.f32 %v519, %v593
      %598 = vrot.lane.b32.xlu0 %v216, 108
      %v599 = vpop.permute.xlu0 %598
      %600 = vrot.lane.b32.xlu0 %v217, 108
      %v601 = vpop.permute.xlu0 %600
      %602 = vrot.lane.b32.xlu0 %v218, 108
      %v603 = vpop.permute.xlu0 %602
      %vm604 = vcmp.lt.s32.totalorder %v230, 108
      %v605 = vsel %vm604, %v601, %v603
      %v606 = vsel %vm604, %v599, %v601
      %v607 = vsel %vm604, %v603, %v599
      %s608 = scalar_lea.vmem %s1, 40
      %v609 = vld [vmem:[%s608] sm:$0xff]
      %v611 = vsel %vm237, %v609, 0
      %613 = vmatpush.msra.mxu0 0.0
      %614 = vmatpush.msra.mxu0 0.0
      %615 = vmatpush.msra.mxu0 0.0
      %616 = vmatpush.msra.mxu0 0.0
      %617 = vmatpush.msra.mxu0 0.0
      %618 = vmatpush.msra.mxu0 0.0
      %619 = vmatpush.msra.mxu0 0.0
      %620 = vmatpush.msra.mxu0 0.0
      %621 = vmatpush.msra.mxu0 0.0
      %622 = vmatpush.msra.mxu0 0.0
      %623 = vmatpush.msra.mxu0 0.0
      %624 = vmatpush.msra.mxu0 0.0
      %625 = vmatpush.msra.mxu0 0.0
      %626 = vmatpush.msra.mxu0 0.0
      %627 = vmatpush.msra.mxu0 0.0
      %628 = vmatpush.msra.mxu0 %v606
      %629 = vmatmul.f32.gmra.mxu0 %v611
      %v630 = vpop.f32.mrf.mxu0
      %v631 = vadd.f32 0.0, %v630
      %632 = vdwg.mxu0
      %633 = vmatpush.msra.mxu0 0.0
      %634 = vmatpush.msra.mxu0 0.0
      %635 = vmatpush.msra.mxu0 0.0
      %636 = vmatpush.msra.mxu0 0.0
      %637 = vmatpush.msra.mxu0 0.0
      %638 = vmatpush.msra.mxu0 0.0
      %639 = vmatpush.msra.mxu0 0.0
      %640 = vmatpush.msra.mxu0 0.0
      %641 = vmatpush.msra.mxu0 0.0
      %642 = vmatpush.msra.mxu0 0.0
      %643 = vmatpush.msra.mxu0 0.0
      %644 = vmatpush.msra.mxu0 0.0
      %645 = vmatpush.msra.mxu0 0.0
      %646 = vmatpush.msra.mxu0 0.0
      %647 = vmatpush.msra.mxu0 0.0
      %648 = vmatpush.msra.mxu0 %v605
      %649 = vmatmul.f32.gmra.mxu0 %v611
      %v650 = vpop.f32.mrf.mxu0
      %v651 = vadd.f32 0.0, %v650
      %652 = vdwg.mxu0
      %653 = vmatpush.msra.mxu0 0.0
      %654 = vmatpush.msra.mxu0 0.0
      %655 = vmatpush.msra.mxu0 0.0
      %656 = vmatpush.msra.mxu0 0.0
      %657 = vmatpush.msra.mxu0 0.0
      %658 = vmatpush.msra.mxu0 0.0
      %659 = vmatpush.msra.mxu0 0.0
      %660 = vmatpush.msra.mxu0 0.0
      %661 = vmatpush.msra.mxu0 0.0
      %662 = vmatpush.msra.mxu0 0.0
      %663 = vmatpush.msra.mxu0 0.0
      %664 = vmatpush.msra.mxu0 0.0
      %665 = vmatpush.msra.mxu0 0.0
      %666 = vmatpush.msra.mxu0 0.0
      %667 = vmatpush.msra.mxu0 0.0
      %668 = vmatpush.msra.mxu0 %v607
      %669 = vmatmul.f32.gmra.mxu0 %v611
      %v670 = vpop.f32.mrf.mxu0
      %v671 = vadd.f32 0.0, %v670
      %672 = vdwg.mxu0
      %v673 = vadd.f32 %v595, %v631
      %v674 = vadd.f32 %v596, %v651
      %v675 = vadd.f32 %v597, %v671
      %676 = vrot.lane.b32.xlu0 %v216, 92
      %v677 = vpop.permute.xlu0 %676
      %678 = vrot.lane.b32.xlu0 %v217, 92
      %v679 = vpop.permute.xlu0 %678
      %680 = vrot.lane.b32.xlu0 %v218, 92
      %v681 = vpop.permute.xlu0 %680
      %vm682 = vcmp.lt.s32.totalorder %v230, 92
      %v683 = vsel %vm682, %v679, %v681
      %v684 = vsel %vm682, %v677, %v679
      %v685 = vsel %vm682, %v681, %v677
      %s686 = scalar_lea.vmem %s1, 48
      %v687 = vld [vmem:[%s686] sm:$0xff]
      %v689 = vsel %vm237, %v687, 0
      %691 = vmatpush.msra.mxu0 0.0
      %692 = vmatpush.msra.mxu0 0.0
      %693 = vmatpush.msra.mxu0 0.0
      %694 = vmatpush.msra.mxu0 0.0
      %695 = vmatpush.msra.mxu0 0.0
      %696 = vmatpush.msra.mxu0 0.0
      %697 = vmatpush.msra.mxu0 0.0
      %698 = vmatpush.msra.mxu0 0.0
      %699 = vmatpush.msra.mxu0 0.0
      %700 = vmatpush.msra.mxu0 0.0
      %701 = vmatpush.msra.mxu0 0.0
      %702 = vmatpush.msra.mxu0 0.0
      %703 = vmatpush.msra.mxu0 0.0
      %704 = vmatpush.msra.mxu0 0.0
      %705 = vmatpush.msra.mxu0 0.0
      %706 = vmatpush.msra.mxu0 %v684
      %707 = vmatmul.f32.gmra.mxu0 %v689
      %v708 = vpop.f32.mrf.mxu0
      %v709 = vadd.f32 0.0, %v708
      %710 = vdwg.mxu0
      %711 = vmatpush.msra.mxu0 0.0
      %712 = vmatpush.msra.mxu0 0.0
      %713 = vmatpush.msra.mxu0 0.0
      %714 = vmatpush.msra.mxu0 0.0
      %715 = vmatpush.msra.mxu0 0.0
      %716 = vmatpush.msra.mxu0 0.0
      %717 = vmatpush.msra.mxu0 0.0
      %718 = vmatpush.msra.mxu0 0.0
      %719 = vmatpush.msra.mxu0 0.0
      %720 = vmatpush.msra.mxu0 0.0
      %721 = vmatpush.msra.mxu0 0.0
      %722 = vmatpush.msra.mxu0 0.0
      %723 = vmatpush.msra.mxu0 0.0
      %724 = vmatpush.msra.mxu0 0.0
      %725 = vmatpush.msra.mxu0 0.0
      %726 = vmatpush.msra.mxu0 %v683
      %727 = vmatmul.f32.gmra.mxu0 %v689
      %v728 = vpop.f32.mrf.mxu0
      %v729 = vadd.f32 0.0, %v728
      %730 = vdwg.mxu0
      %731 = vmatpush.msra.mxu0 0.0
      %732 = vmatpush.msra.mxu0 0.0
      %733 = vmatpush.msra.mxu0 0.0
      %734 = vmatpush.msra.mxu0 0.0
      %735 = vmatpush.msra.mxu0 0.0
      %736 = vmatpush.msra.mxu0 0.0
      %737 = vmatpush.msra.mxu0 0.0
      %738 = vmatpush.msra.mxu0 0.0
      %739 = vmatpush.msra.mxu0 0.0
      %740 = vmatpush.msra.mxu0 0.0
      %741 = vmatpush.msra.mxu0 0.0
      %742 = vmatpush.msra.mxu0 0.0
      %743 = vmatpush.msra.mxu0 0.0
      %744 = vmatpush.msra.mxu0 0.0
      %745 = vmatpush.msra.mxu0 0.0
      %746 = vmatpush.msra.mxu0 %v685
      %747 = vmatmul.f32.gmra.mxu0 %v689
      %v748 = vpop.f32.mrf.mxu0
      %v749 = vadd.f32 0.0, %v748
      %750 = vdwg.mxu0
      %v751 = vadd.f32 %v673, %v709
      %v752 = vadd.f32 %v674, %v729
      %v753 = vadd.f32 %v675, %v749
      %754 = vrot.lane.b32.xlu0 %v216, 91
      %v755 = vpop.permute.xlu0 %754
      %756 = vrot.lane.b32.xlu0 %v217, 91
      %v757 = vpop.permute.xlu0 %756
      %758 = vrot.lane.b32.xlu0 %v218, 91
      %v759 = vpop.permute.xlu0 %758
      %vm760 = vcmp.lt.s32.totalorder %v230, 91
      %v761 = vsel %vm760, %v757, %v759
      %v762 = vsel %vm760, %v755, %v757
      %v763 = vsel %vm760, %v759, %v755
      %s764 = scalar_lea.vmem %s1, 56
      %v765 = vld [vmem:[%s764] sm:$0xff]
      %v767 = vsel %vm237, %v765, 0
      %769 = vmatpush.msra.mxu0 0.0
      %770 = vmatpush.msra.mxu0 0.0
      %771 = vmatpush.msra.mxu0 0.0
      %772 = vmatpush.msra.mxu0 0.0
      %773 = vmatpush.msra.mxu0 0.0
      %774 = vmatpush.msra.mxu0 0.0
      %775 = vmatpush.msra.mxu0 0.0
      %776 = vmatpush.msra.mxu0 0.0
      %777 = vmatpush.msra.mxu0 0.0
      %778 = vmatpush.msra.mxu0 0.0
      %779 = vmatpush.msra.mxu0 0.0
      %780 = vmatpush.msra.mxu0 0.0
      %781 = vmatpush.msra.mxu0 0.0
      %782 = vmatpush.msra.mxu0 0.0
      %783 = vmatpush.msra.mxu0 0.0
      %784 = vmatpush.msra.mxu0 %v762
      %785 = vmatmul.f32.gmra.mxu0 %v767
      %v786 = vpop.f32.mrf.mxu0
      %v787 = vadd.f32 0.0, %v786
      %788 = vdwg.mxu0
      %789 = vmatpush.msra.mxu0 0.0
      %790 = vmatpush.msra.mxu0 0.0
      %791 = vmatpush.msra.mxu0 0.0
      %792 = vmatpush.msra.mxu0 0.0
      %793 = vmatpush.msra.mxu0 0.0
      %794 = vmatpush.msra.mxu0 0.0
      %795 = vmatpush.msra.mxu0 0.0
      %796 = vmatpush.msra.mxu0 0.0
      %797 = vmatpush.msra.mxu0 0.0
      %798 = vmatpush.msra.mxu0 0.0
      %799 = vmatpush.msra.mxu0 0.0
      %800 = vmatpush.msra.mxu0 0.0
      %801 = vmatpush.msra.mxu0 0.0
      %802 = vmatpush.msra.mxu0 0.0
      %803 = vmatpush.msra.mxu0 0.0
      %804 = vmatpush.msra.mxu0 %v761
      %805 = vmatmul.f32.gmra.mxu0 %v767
      %v806 = vpop.f32.mrf.mxu0
      %v807 = vadd.f32 0.0, %v806
      %808 = vdwg.mxu0
      %809 = vmatpush.msra.mxu0 0.0
      %810 = vmatpush.msra.mxu0 0.0
      %811 = vmatpush.msra.mxu0 0.0
      %812 = vmatpush.msra.mxu0 0.0
      %813 = vmatpush.msra.mxu0 0.0
      %814 = vmatpush.msra.mxu0 0.0
      %815 = vmatpush.msra.mxu0 0.0
      %816 = vmatpush.msra.mxu0 0.0
      %817 = vmatpush.msra.mxu0 0.0
      %818 = vmatpush.msra.mxu0 0.0
      %819 = vmatpush.msra.mxu0 0.0
      %820 = vmatpush.msra.mxu0 0.0
      %821 = vmatpush.msra.mxu0 0.0
      %822 = vmatpush.msra.mxu0 0.0
      %823 = vmatpush.msra.mxu0 0.0
      %824 = vmatpush.msra.mxu0 %v763
      %825 = vmatmul.f32.gmra.mxu0 %v767
      %v826 = vpop.f32.mrf.mxu0
      %v827 = vadd.f32 0.0, %v826
      %828 = vdwg.mxu0
      %v829 = vadd.f32 %v751, %v787
      %v830 = vadd.f32 %v752, %v807
      %v831 = vadd.f32 %v753, %v827
      %832 = vrot.lane.b32.xlu0 %v216, 90
      %v833 = vpop.permute.xlu0 %832
      %834 = vrot.lane.b32.xlu0 %v217, 90
      %v835 = vpop.permute.xlu0 %834
      %836 = vrot.lane.b32.xlu0 %v218, 90
      %v837 = vpop.permute.xlu0 %836
      %vm838 = vcmp.lt.s32.totalorder %v230, 90
      %v839 = vsel %vm838, %v835, %v837
      %v840 = vsel %vm838, %v833, %v835
      %v841 = vsel %vm838, %v837, %v833
      %s842 = scalar_lea.vmem %s1, 64
      %v843 = vld [vmem:[%s842] sm:$0xff]
      %v845 = vsel %vm237, %v843, 0
      %847 = vmatpush.msra.mxu0 0.0
      %848 = vmatpush.msra.mxu0 0.0
      %849 = vmatpush.msra.mxu0 0.0
      %850 = vmatpush.msra.mxu0 0.0
      %851 = vmatpush.msra.mxu0 0.0
      %852 = vmatpush.msra.mxu0 0.0
      %853 = vmatpush.msra.mxu0 0.0
      %854 = vmatpush.msra.mxu0 0.0
      %855 = vmatpush.msra.mxu0 0.0
      %856 = vmatpush.msra.mxu0 0.0
      %857 = vmatpush.msra.mxu0 0.0
      %858 = vmatpush.msra.mxu0 0.0
      %859 = vmatpush.msra.mxu0 0.0
      %860 = vmatpush.msra.mxu0 0.0
      %861 = vmatpush.msra.mxu0 0.0
      %862 = vmatpush.msra.mxu0 %v840
      %863 = vmatmul.f32.gmra.mxu0 %v845
      %v864 = vpop.f32.mrf.mxu0
      %v865 = vadd.f32 0.0, %v864
      %866 = vdwg.mxu0
      %867 = vmatpush.msra.mxu0 0.0
      %868 = vmatpush.msra.mxu0 0.0
      %869 = vmatpush.msra.mxu0 0.0
      %870 = vmatpush.msra.mxu0 0.0
      %871 = vmatpush.msra.mxu0 0.0
      %872 = vmatpush.msra.mxu0 0.0
      %873 = vmatpush.msra.mxu0 0.0
      %874 = vmatpush.msra.mxu0 0.0
      %875 = vmatpush.msra.mxu0 0.0
      %876 = vmatpush.msra.mxu0 0.0
      %877 = vmatpush.msra.mxu0 0.0
      %878 = vmatpush.msra.mxu0 0.0
      %879 = vmatpush.msra.mxu0 0.0
      %880 = vmatpush.msra.mxu0 0.0
      %881 = vmatpush.msra.mxu0 0.0
      %882 = vmatpush.msra.mxu0 %v839
      %883 = vmatmul.f32.gmra.mxu0 %v845
      %v884 = vpop.f32.mrf.mxu0
      %v885 = vadd.f32 0.0, %v884
      %886 = vdwg.mxu0
      %887 = vmatpush.msra.mxu0 0.0
      %888 = vmatpush.msra.mxu0 0.0
      %889 = vmatpush.msra.mxu0 0.0
      %890 = vmatpush.msra.mxu0 0.0
      %891 = vmatpush.msra.mxu0 0.0
      %892 = vmatpush.msra.mxu0 0.0
      %893 = vmatpush.msra.mxu0 0.0
      %894 = vmatpush.msra.mxu0 0.0
      %895 = vmatpush.msra.mxu0 0.0
      %896 = vmatpush.msra.mxu0 0.0
      %897 = vmatpush.msra.mxu0 0.0
      %898 = vmatpush.msra.mxu0 0.0
      %899 = vmatpush.msra.mxu0 0.0
      %900 = vmatpush.msra.mxu0 0.0
      %901 = vmatpush.msra.mxu0 0.0
      %902 = vmatpush.msra.mxu0 %v841
      %903 = vmatmul.f32.gmra.mxu0 %v845
      %v904 = vpop.f32.mrf.mxu0
      %v905 = vadd.f32 0.0, %v904
      %906 = vdwg.mxu0
      %v907 = vadd.f32 %v829, %v865
      %v908 = vadd.f32 %v830, %v885
      %v909 = vadd.f32 %v831, %v905
      %v910 = vmax.f32 %v907, 0.0
      %v911 = vmax.f32 %v908, 0.0
      %v912 = vmax.f32 %v909, 0.0
      %v913 = vsub.f32 %v910, %v219
      %v914 = vsub.f32 %v911, %v220
      %v915 = vsub.f32 %v912, %v221
      %v916 = vld [vmem:[%s3] sm:$0x7]
      %v918 = vperm.slane %v916, 0
      %v919 = vperm.slane %v916, 1
      %v920 = vperm.slane %v916, 2
      %v924 = vmul.f32 %v913, %v918
      %v925 = vmul.f32 %v914, %v919
      %v926 = vmul.f32 %v915, %v920
      %v927 = vmul.f32 %v924, %v924
      %v928 = vmul.f32 %v925, %v925
      %v929 = vmul.f32 %v926, %v926
      %v930 = vadd.f32 %v927, %v928
      %v931 = vadd.f32 %v930, %v929
      %932 = vadd.xlane.f32.xlu0 %v931
      %v933 = vpop.xlane.xlu0 %932
      %v934 = vrot.slane %v933, 4
      %v935 = vadd.f32 %v933, %v934
      %v936 = vrot.slane %v935, 2
      %v937 = vadd.f32 %v935, %v936
      %v938 = vrot.slane %v937, 1
      %v939 = vadd.f32 %v937, %v938
      %s940 = vtos %v939
      %v941 = vstv %s940
      %942 = vst [vmem:[%s215] sm:$0xff] %v941
      %p943 = scmp.lt.s32.totalorder %s15, 1
      %s944 = scalar_select %p943, %s15, 1
      %s945 = smul.addr %s944, 8
      %s946 = scalar_lea.vmem %s4, %s945
      // Predicated region
      $region37: #{network_forward.1} parent=35 // pred_check
        %p947 = pneg %p127
      $region38: #{network_forward.1} parent=35 // pred_check_branch
        %949 = sbr.rel (%p947) target = $region40
      $region39: #{network_forward.1} parent=35 // pred_region
        _
      $region40: #{network_forward.1} parent=35 // pred_fallthru
        _
    $region36: #{network_forward.1} parent=5 // pred_fallthru
      _
    %p950 = scmp.le.s32.totalorder 2, %s10
    // Predicated region
    $region41: #{network_forward.1} parent=5 // pred_check
      %p951 = pneg %p950
    $region42: #{network_forward.1} parent=5 // pred_check_branch
      %953 = sbr.rel (%p951) target = $region44
    $region43: #{network_forward.1} parent=5 // pred_region
      %s954 = ssub.s32 %s10, 2
      // Predicated region
      $region45: #{network_forward.1} parent=43 // pred_check
        %p955 = pneg %p133
      $region46: #{network_forward.1} parent=43 // pred_check_branch
        %957 = sbr.rel (%p955) target = $region48
      $region47: #{network_forward.1} parent=43 // pred_region
        %p958 = scmp.lt.s32.totalorder %s16, 1
        %s959 = scalar_select %p958, %s16, 1
        %s960 = smul.addr %s959, 8
        %s961 = scalar_lea.vmem %s4, %s960
      $region48: #{network_forward.1} parent=43 // pred_fallthru
        _
    $region44: #{network_forward.1} parent=5 // pred_fallthru
      _
  $region6: #{network_forward.1} parent=0 // loop_footer
    %s14 = sadd.s32 1, %s10
  $region7: #{network_forward.1} parent=0 // loop_footer_branch
    %9 = sbr.rel target = $region3
  $region8: #{network_forward.1} parent=0 // loop_exit
    _

</llo_original>
